<compile_context>
chip_gen: v7x
topology: tpu7x:2x2x1
jax: 0.10.0
libtpu: 0.0.40
codegen_flags: <defaults>
</compile_context>

<pallas_src>
import functools

import jax
import jax.numpy as jnp
from jax.experimental import pallas as pl
from jax.experimental.pallas import tpu as pltpu

LANE = 128


def _round_up(n, m):
    return (n + m - 1) // m * m


# --------------------------------------------------------------------------- #
# Kernel
# --------------------------------------------------------------------------- #
def _mlp_kernel(x_ref,
                w1_ref, b1_ref,
                w2_ref, b2_ref,
                w3_ref, b3_ref,
                w4_ref, b4_ref,
                o_ref,
                *, bf16_tanh):
    """One batch tile of the fused 4-layer tanh MLP.

    x_ref : (TILE_B, in_dim)   f32  (raw input, unpadded K)
    w*    : bf16, hidden dims zero-padded to a multiple of 128 lanes
    b*    : (1, N)             f32
    o_ref : (TILE_B, out_dim)  bf16 (or requested output dtype)
    """

    def layer(h, w_ref, b_ref):
        z = jnp.dot(h, w_ref[...], preferred_element_type=jnp.float32) + b_ref[...]
        if bf16_tanh:
            # v6e/v7x: bf16-capable EUP -> ~2x tanh throughput, result already
            # bf16 for the next MXU push.
            return jnp.tanh(z.astype(jnp.bfloat16))
        # v5e: no bf16 EUP/VPU -> keep tanh in f32, downcast for the next dot.
        return jnp.tanh(z).astype(jnp.bfloat16)

    h = x_ref[...].astype(jnp.bfloat16)
    h = layer(h, w1_ref, b1_ref)
    h = layer(h, w2_ref, b2_ref)
    h = layer(h, w3_ref, b3_ref)
    h = layer(h, w4_ref, b4_ref)
    o_ref[...] = h.astype(o_ref.dtype)


# --------------------------------------------------------------------------- #
# Parameter handling
# --------------------------------------------------------------------------- #
def init_params(key, ofdm_size, bits_per_symbol, expansion):
    """PyTorch nn.Linear default init (U[-1/sqrt(fan_in), 1/sqrt(fan_in)]).

    Weights stored as [in_features, out_features] (transposed vs. PyTorch), f32."""
    in_dim = 4 * ofdm_size + 1
    hidden = expansion * bits_per_symbol * ofdm_size
    out_dim = bits_per_symbol * ofdm_size

    dims = [(in_dim, hidden), (hidden, hidden), (hidden, hidden), (hidden, out_dim)]
    params = {}
    for i, (fan_in, fan_out) in enumerate(dims, start=1):
        key, kw, kb = jax.random.split(key, 3)
        bound = 1.0 / jnp.sqrt(fan_in)
        params[f"w{i}"] = jax.random.uniform(
            kw, (fan_in, fan_out), jnp.float32, minval=-bound, maxval=bound)
        params[f"b{i}"] = jax.random.uniform(
            kb, (1, fan_out), jnp.float32, minval=-bound, maxval=bound)
    return params


def prepare_params(params):
    """Zero-pad the HIDDEN dims to a multiple of 128 lanes; weights -> bf16.

    K (input) and N (output) dims stay unpadded (full-extent BlockSpecs are legal
    and the kernel output is stored unpadded).  Zero padding of hidden columns is
    exact: zero weights + zero bias -> tanh(0) = 0, which contributes 0 downstream.
    """
    in_dim, hidden = params["w1"].shape
    out_dim = params["w4"].shape[1]
    h_pad = _round_up(hidden, LANE)

    def padw(a, rows, cols):
        return jnp.pad(a, ((0, rows - a.shape[0]),
                           (0, cols - a.shape[1]))).astype(jnp.bfloat16)

    def padb(a, cols):
        return jnp.pad(a, ((0, 0), (0, cols - a.shape[1]))).astype(jnp.float32)

    return {
        "w1": padw(params["w1"], in_dim, h_pad), "b1": padb(params["b1"], h_pad),
        "w2": padw(params["w2"], h_pad, h_pad), "b2": padb(params["b2"], h_pad),
        "w3": padw(params["w3"], h_pad, h_pad), "b3": padb(params["b3"], h_pad),
        "w4": padw(params["w4"], h_pad, out_dim), "b4": padb(params["b4"], out_dim),
    }


# --------------------------------------------------------------------------- #
# Wrapper
# --------------------------------------------------------------------------- #
def _default_bf16_tanh():
    """bf16 tanh only where the EUP is bf16-capable (v6e / v7x)."""
    try:
        kind = jax.devices()[0].device_kind.lower()
    except Exception:
        return False
    return ("v6" in kind) or ("v7" in kind)


def _choose_tile_b(batch, tile_b):
    """Biggest tile <= tile_b that covers the batch; >=2 grid steps for large
    batches so the 'parallel' axis can shard across v7x's two TensorCores."""
    tile = min(tile_b, _round_up(batch, 8))
    if batch >= 512:  # only split when each half is still a healthy tile
        tile = min(tile, _round_up(pl.cdiv(batch, 2), 8))
    return max(8, tile)


@functools.partial(jax.jit, static_argnames=("tile_b", "bf16_tanh", "out_dtype"))
def llr_estimator_channel(x, pparams, *, tile_b=512, bf16_tanh=None,
                          out_dtype=jnp.bfloat16):
    """x: [batch, 4*ofdm+1] f32; pparams: output of prepare_params()."""
    batch, in_dim = x.shape
    h_pad = pparams["w2"].shape[0]
    out_dim = pparams["w4"].shape[1]
    assert pparams["w1"].shape[0] == in_dim

    if bf16_tanh is None:
        bf16_tanh = _default_bf16_tanh()

    tile = _choose_tile_b(batch, tile_b)
    grid = (pl.cdiv(batch, tile),)

    # Advisory cost estimate for the XLA scheduler.
    flops = 2 * batch * (in_dim * h_pad + 2 * h_pad * h_pad + h_pad * out_dim)
    transcendentals = batch * (3 * h_pad + out_dim)
    bytes_accessed = (
        batch * in_dim * 4                                                   # x (f32)
        + 2 * (in_dim * h_pad + 2 * h_pad * h_pad + h_pad * out_dim)         # weights
        + 4 * (3 * h_pad + out_dim)                                          # biases
        + batch * out_dim * jnp.dtype(out_dtype).itemsize                    # output
    )

    def const_spec(shape):
        return pl.BlockSpec(shape, lambda i: (0, 0))

    out = pl.pallas_call(
        functools.partial(_mlp_kernel, bf16_tanh=bf16_tanh),
        out_shape=jax.ShapeDtypeStruct((batch, out_dim), out_dtype),
        grid=grid,
        in_specs=[
            pl.BlockSpec((tile, in_dim), lambda i: (i, 0)),      # x tile (f32)
            const_spec(pparams["w1"].shape), const_spec(pparams["b1"].shape),
            const_spec(pparams["w2"].shape), const_spec(pparams["b2"].shape),
            const_spec(pparams["w3"].shape), const_spec(pparams["b3"].shape),
            const_spec(pparams["w4"].shape), const_spec(pparams["b4"].shape),
        ],
        out_specs=pl.BlockSpec((tile, out_dim), lambda i: (i, 0)),
        compiler_params=pltpu.CompilerParams(
            dimension_semantics=("parallel",),
            vmem_limit_bytes=32 * 1024 * 1024,
        ),
        cost_estimate=pl.CostEstimate(
            flops=flops,
            transcendentals=transcendentals,
            bytes_accessed=bytes_accessed,
        ),
    )(
        x,
        pparams["w1"], pparams["b1"],
        pparams["w2"], pparams["b2"],
        pparams["w3"], pparams["b3"],
        pparams["w4"], pparams["b4"],
    )
    return out


def reference_forward(x, params):
    """Pure-JAX f32 reference matching the PyTorch forward."""
    h = jnp.tanh(x @ params["w1"] + params["b1"])
    h = jnp.tanh(h @ params["w2"] + params["b2"])
    h = jnp.tanh(h @ params["w3"] + params["b3"])
    return jnp.tanh(h @ params["w4"] + params["b4"])


if __name__ == "__main__":
    # Small shapes consistent with the module.
    ofdm_size = 16
    bits_per_symbol = 4
    expansion = 2
    batch = 8

    in_dim = 4 * ofdm_size + 1                 # 65
    out_dim = bits_per_symbol * ofdm_size      # 64

    key = jax.random.PRNGKey(0)
    key, kx = jax.random.split(key)
    x = jax.random.normal(kx, (batch, in_dim), jnp.float32)

    params = init_params(key, ofdm_size, bits_per_symbol, expansion)
    pparams = prepare_params(params)

    out = llr_estimator_channel(x, pparams)
    out = jax.block_until_ready(out)

    ref = reference_forward(x, params)
    assert out.shape == (batch, out_dim), out.shape
    # bf16 matmul inputs / bf16 tanh / bf16 output vs f32 reference.
    max_err = float(jnp.max(jnp.abs(out.astype(jnp.float32) - ref)))
    assert max_err < 4e-2, max_err

    print("KERNEL_OK")
</pallas_src>

<mosaic_0001>
module attributes {stable_mosaic.version = 11 : i64} {
  func.func @_mlp_kernel(%arg0: i32, %arg1: memref<8x65xf32, #tpu.memory_space<vmem>>, %arg2: memref<65x128xbf16, #tpu.memory_space<vmem>>, %arg3: memref<1x128xf32, #tpu.memory_space<vmem>>, %arg4: memref<128x128xbf16, #tpu.memory_space<vmem>>, %arg5: memref<1x128xf32, #tpu.memory_space<vmem>>, %arg6: memref<128x128xbf16, #tpu.memory_space<vmem>>, %arg7: memref<1x128xf32, #tpu.memory_space<vmem>>, %arg8: memref<128x64xbf16, #tpu.memory_space<vmem>>, %arg9: memref<1x64xf32, #tpu.memory_space<vmem>>, %arg10: memref<8x64xbf16, #tpu.memory_space<vmem>>) attributes {dimension_semantics = [#tpu.dimension_semantics<parallel>], iteration_bounds = array<i64: 1>, scalar_prefetch = 0 : i64, scratch_operands = 0 : i64, tpu.core_type = #tpu.core_type<tc>, window_params = [{transform_indices = @transform_0, window_bounds = array<i64: 8, 65>}, {pipeline_mode = #tpu.pipeline_mode<synchronous>, transform_indices = @transform_1, window_bounds = array<i64: 65, 128>}, {pipeline_mode = #tpu.pipeline_mode<synchronous>, transform_indices = @transform_2, window_bounds = array<i64: 1, 128>}, {pipeline_mode = #tpu.pipeline_mode<synchronous>, transform_indices = @transform_3, window_bounds = array<i64: 128, 128>}, {pipeline_mode = #tpu.pipeline_mode<synchronous>, transform_indices = @transform_4, window_bounds = array<i64: 1, 128>}, {pipeline_mode = #tpu.pipeline_mode<synchronous>, transform_indices = @transform_5, window_bounds = array<i64: 128, 128>}, {pipeline_mode = #tpu.pipeline_mode<synchronous>, transform_indices = @transform_6, window_bounds = array<i64: 1, 128>}, {pipeline_mode = #tpu.pipeline_mode<synchronous>, transform_indices = @transform_7, window_bounds = array<i64: 128, 64>}, {pipeline_mode = #tpu.pipeline_mode<synchronous>, transform_indices = @transform_8, window_bounds = array<i64: 1, 64>}, {transform_indices = @transform_9, window_bounds = array<i64: 8, 64>}]} {
    %c0 = arith.constant 0 : index
    %c0_0 = arith.constant 0 : index
    %0 = vector.load %arg1[%c0, %c0_0] : memref<8x65xf32, #tpu.memory_space<vmem>>, vector<8x65xf32>
    %1 = arith.truncf %0 : vector<8x65xf32> to vector<8x65xbf16>
    %c0_1 = arith.constant 0 : index
    %c0_2 = arith.constant 0 : index
    %2 = vector.load %arg2[%c0_1, %c0_2] : memref<65x128xbf16, #tpu.memory_space<vmem>>, vector<65x128xbf16>
    %cst = arith.constant dense<0.000000e+00> : vector<8x128xf32>
    %3 = tpu.matmul %1, %2, %cst {dimension_numbers = #tpu.dot_dimension_numbers<[1], [0], [0], [1], [0, 0, 1, 1], [], []>} : vector<8x65xbf16>, vector<65x128xbf16>, vector<8x128xf32> -> vector<8x128xf32>
    %c0_3 = arith.constant 0 : index
    %c0_4 = arith.constant 0 : index
    %4 = vector.load %arg3[%c0_3, %c0_4] : memref<1x128xf32, #tpu.memory_space<vmem>>, vector<1x128xf32>
    %5 = vector.broadcast %4 : vector<1x128xf32> to vector<8x128xf32>
    %6 = arith.addf %3, %5 : vector<8x128xf32>
    %7 = math.tanh %6 : vector<8x128xf32>
    %8 = arith.truncf %7 : vector<8x128xf32> to vector<8x128xbf16>
    %c0_5 = arith.constant 0 : index
    %c0_6 = arith.constant 0 : index
    %9 = vector.load %arg4[%c0_5, %c0_6] : memref<128x128xbf16, #tpu.memory_space<vmem>>, vector<128x128xbf16>
    %cst_7 = arith.constant dense<0.000000e+00> : vector<8x128xf32>
    %10 = tpu.matmul %8, %9, %cst_7 {dimension_numbers = #tpu.dot_dimension_numbers<[1], [0], [0], [1], [0, 0, 1, 1], [], []>} : vector<8x128xbf16>, vector<128x128xbf16>, vector<8x128xf32> -> vector<8x128xf32>
    %c0_8 = arith.constant 0 : index
    %c0_9 = arith.constant 0 : index
    %11 = vector.load %arg5[%c0_8, %c0_9] : memref<1x128xf32, #tpu.memory_space<vmem>>, vector<1x128xf32>
    %12 = vector.broadcast %11 : vector<1x128xf32> to vector<8x128xf32>
    %13 = arith.addf %10, %12 : vector<8x128xf32>
    %14 = math.tanh %13 : vector<8x128xf32>
    %15 = arith.truncf %14 : vector<8x128xf32> to vector<8x128xbf16>
    %c0_10 = arith.constant 0 : index
    %c0_11 = arith.constant 0 : index
    %16 = vector.load %arg6[%c0_10, %c0_11] : memref<128x128xbf16, #tpu.memory_space<vmem>>, vector<128x128xbf16>
    %cst_12 = arith.constant dense<0.000000e+00> : vector<8x128xf32>
    %17 = tpu.matmul %15, %16, %cst_12 {dimension_numbers = #tpu.dot_dimension_numbers<[1], [0], [0], [1], [0, 0, 1, 1], [], []>} : vector<8x128xbf16>, vector<128x128xbf16>, vector<8x128xf32> -> vector<8x128xf32>
    %c0_13 = arith.constant 0 : index
    %c0_14 = arith.constant 0 : index
    %18 = vector.load %arg7[%c0_13, %c0_14] : memref<1x128xf32, #tpu.memory_space<vmem>>, vector<1x128xf32>
    %19 = vector.broadcast %18 : vector<1x128xf32> to vector<8x128xf32>
    %20 = arith.addf %17, %19 : vector<8x128xf32>
    %21 = math.tanh %20 : vector<8x128xf32>
    %22 = arith.truncf %21 : vector<8x128xf32> to vector<8x128xbf16>
    %c0_15 = arith.constant 0 : index
    %c0_16 = arith.constant 0 : index
    %23 = vector.load %arg8[%c0_15, %c0_16] : memref<128x64xbf16, #tpu.memory_space<vmem>>, vector<128x64xbf16>
    %cst_17 = arith.constant dense<0.000000e+00> : vector<8x64xf32>
    %24 = tpu.matmul %22, %23, %cst_17 {dimension_numbers = #tpu.dot_dimension_numbers<[1], [0], [0], [1], [0, 0, 1, 1], [], []>} : vector<8x128xbf16>, vector<128x64xbf16>, vector<8x64xf32> -> vector<8x64xf32>
    %c0_18 = arith.constant 0 : index
    %c0_19 = arith.constant 0 : index
    %25 = vector.load %arg9[%c0_18, %c0_19] : memref<1x64xf32, #tpu.memory_space<vmem>>, vector<1x64xf32>
    %26 = vector.broadcast %25 : vector<1x64xf32> to vector<8x64xf32>
    %27 = arith.addf %24, %26 : vector<8x64xf32>
    %28 = math.tanh %27 : vector<8x64xf32>
    %29 = arith.truncf %28 : vector<8x64xf32> to vector<8x64xbf16>
    %c0_20 = arith.constant 0 : index
    %c0_21 = arith.constant 0 : index
    %30 = vector.load %arg10[%c0_20, %c0_21] : memref<8x64xbf16, #tpu.memory_space<vmem>>, vector<8x64xbf16>
    tpu.vector_store %arg10[%c0_20, %c0_21], %29 {strides = array<i32>} : memref<8x64xbf16, #tpu.memory_space<vmem>>, vector<8x64xbf16>,
    return
  }
  func.func @transform_0(%arg0: i32) -> (i32, i32) {
    %c0_i32 = arith.constant 0 : i32
    %c0_i32_0 = arith.constant 0 : i32
    return %arg0, %c0_i32 : i32, i32
  }
  func.func @transform_1(%arg0: i32) -> (i32, i32) {
    %c0_i32 = arith.constant 0 : i32
    %c0_i32_0 = arith.constant 0 : i32
    %c0_i32_1 = arith.constant 0 : i32
    return %c0_i32, %c0_i32_0 : i32, i32
  }
  func.func @transform_2(%arg0: i32) -> (i32, i32) {
    %c0_i32 = arith.constant 0 : i32
    %c0_i32_0 = arith.constant 0 : i32
    %c0_i32_1 = arith.constant 0 : i32
    return %c0_i32, %c0_i32_0 : i32, i32
  }
  func.func @transform_3(%arg0: i32) -> (i32, i32) {
    %c0_i32 = arith.constant 0 : i32
    %c0_i32_0 = arith.constant 0 : i32
    %c0_i32_1 = arith.constant 0 : i32
    return %c0_i32, %c0_i32_0 : i32, i32
  }
  func.func @transform_4(%arg0: i32) -> (i32, i32) {
    %c0_i32 = arith.constant 0 : i32
    %c0_i32_0 = arith.constant 0 : i32
    %c0_i32_1 = arith.constant 0 : i32
    return %c0_i32, %c0_i32_0 : i32, i32
  }
  func.func @transform_5(%arg0: i32) -> (i32, i32) {
    %c0_i32 = arith.constant 0 : i32
    %c0_i32_0 = arith.constant 0 : i32
    %c0_i32_1 = arith.constant 0 : i32
    return %c0_i32, %c0_i32_0 : i32, i32
  }
  func.func @transform_6(%arg0: i32) -> (i32, i32) {
    %c0_i32 = arith.constant 0 : i32
    %c0_i32_0 = arith.constant 0 : i32
    %c0_i32_1 = arith.constant 0 : i32
    return %c0_i32, %c0_i32_0 : i32, i32
  }
  func.func @transform_7(%arg0: i32) -> (i32, i32) {
    %c0_i32 = arith.constant 0 : i32
    %c0_i32_0 = arith.constant 0 : i32
    %c0_i32_1 = arith.constant 0 : i32
    return %c0_i32, %c0_i32_0 : i32, i32
  }
  func.func @transform_8(%arg0: i32) -> (i32, i32) {
    %c0_i32 = arith.constant 0 : i32
    %c0_i32_0 = arith.constant 0 : i32
    %c0_i32_1 = arith.constant 0 : i32
    return %c0_i32, %c0_i32_0 : i32, i32
  }
  func.func @transform_9(%arg0: i32) -> (i32, i32) {
    %c0_i32 = arith.constant 0 : i32
    %c0_i32_0 = arith.constant 0 : i32
    return %arg0, %c0_i32 : i32, i32
  }
}

</mosaic_0001>

<llo_original>
// kernel: llr_estimator_channel.1
$region0: #{llr_estimator_channel.1}
  #allocation0 [shape = 'u32[]', space=smem, size = 0x4, offset = 0x4, fixed_abs, tag = 'smem constant byte address 0x4 - core index']
  #allocation1 [shape = 'u32[144,128]{1,0:T(1,128)}', space=vmem, size = 0x12000, scoped, tag = 'internal scratch']
  %s0 = inlined_call_operand.vmem [shape: f32[8,65], index: 0, kind: input, shape index: {}]
  %s1 = inlined_call_operand.vmem [shape: bf16[65,128], index: 1, kind: input, shape index: {}]
  %s2 = inlined_call_operand.vmem [shape: f32[1,128], index: 2, kind: input, shape index: {}]
  %s3 = inlined_call_operand.vmem [shape: bf16[128,128], index: 3, kind: input, shape index: {}]
  %s4 = inlined_call_operand.vmem [shape: f32[1,128], index: 4, kind: input, shape index: {}]
  %s5 = inlined_call_operand.hbm [shape: bf16[128,128], index: 5, kind: input, shape index: {}]
  %s6 = inlined_call_operand.vmem [shape: f32[1,128], index: 6, kind: input, shape index: {}]
  %s7 = inlined_call_operand.vmem [shape: bf16[128,64], index: 7, kind: input, shape index: {}]
  %s8 = inlined_call_operand.vmem [shape: f32[1,64], index: 8, kind: input, shape index: {}]
  %s9 = inlined_call_operand.hbm [shape: bf16[8,64], index: 9, kind: output, shape index: {}]
  %s10 = sld [smem:[#allocation0]]
  $region50: #{llr_estimator_channel.1} parent=0
    _
  %s12 = ssub.s32 1, %s10
  %s13 = scalar_select 0, %s12, %s10
  $region1: #{llr_estimator_channel.1} parent=0
    #allocation2 [shape = 'u8[32768]{0}', space=vmem, size = 0x8000, scoped, tag = 'input window, operand 5, single buffered']
    #allocation3 [shape = 's32[1]{0}', space=sflag, size = 0x4, scoped, tag = 'scoped memory for llr_estimator_channel.1']
    #allocation4 [shape = 's32[1]{0}', space=sflag, size = 0x4, scoped, tag = 'scoped memory for llr_estimator_channel.1']
    #allocation5 [shape = 'u8[2048]{0}', space=vmem, size = 0x800, scoped, tag = 'output window, operand 0, single buffered']
    %14 = vsyncpa [#allocation3], 0
    %15 = vsyncpa [#allocation4], 0
    // Predicated region
    $region2: #{llr_estimator_channel.1} parent=1 // pred_check
      _
    $region3: #{llr_estimator_channel.1} parent=1 // pred_check_branch
      %17 = sbr.rel (0) target = $region5
    $region4: #{llr_estimator_channel.1} parent=1 // pred_region
      _
    $region5: #{llr_estimator_channel.1} parent=1 // pred_fallthru
      _
    // Predicated region
    $region6: #{llr_estimator_channel.1} parent=1 // pred_check
      _
    $region7: #{llr_estimator_channel.1} parent=1 // pred_check_branch
      %19 = sbr.rel (0) target = $region9
    $region8: #{llr_estimator_channel.1} parent=1 // pred_region
      _
    $region9: #{llr_estimator_channel.1} parent=1 // pred_fallthru
      _
    // Predicated region
    $region10: #{llr_estimator_channel.1} parent=1 // pred_check
      _
    $region11: #{llr_estimator_channel.1} parent=1 // pred_check_branch
      %21 = sbr.rel (0) target = $region13
    $region12: #{llr_estimator_channel.1} parent=1 // pred_region
      _
    $region13: #{llr_estimator_channel.1} parent=1 // pred_fallthru
      _
    // Predicated region
    $region14: #{llr_estimator_channel.1} parent=1 // pred_check
      _
    $region15: #{llr_estimator_channel.1} parent=1 // pred_check_branch
      %23 = sbr.rel (0) target = $region17
    $region16: #{llr_estimator_channel.1} parent=1 // pred_region
      _
    $region17: #{llr_estimator_channel.1} parent=1 // pred_fallthru
      _
    // Predicated region
    $region18: #{llr_estimator_channel.1} parent=1 // pred_check
      _
    $region19: #{llr_estimator_channel.1} parent=1 // pred_check_branch
      %25 = sbr.rel (0) target = $region21
    $region20: #{llr_estimator_channel.1} parent=1 // pred_region
      _
    $region21: #{llr_estimator_channel.1} parent=1 // pred_fallthru
      _
    // Predicated region
    $region22: #{llr_estimator_channel.1} parent=1 // pred_check
      _
    $region23: #{llr_estimator_channel.1} parent=1 // pred_check_branch
      %27 = sbr.rel (0) target = $region25
    $region24: #{llr_estimator_channel.1} parent=1 // pred_region
      %s29 = ssub.s32 1024, 1024
      %30 = vsyncadd [#allocation3], %s29
      %s31 = sshll.u32 [#allocation2], 4
      %s32 = int_to_ptr.vmem [resolvable:$true] %s31
      %37 = dma.hbm_to_vmem [thread:$0]  %s5, 1024, %s32, [#allocation3], 64, 64, 4
    $region25: #{llr_estimator_channel.1} parent=1 // pred_fallthru
      _
    // Predicated region
    $region26: #{llr_estimator_channel.1} parent=1 // pred_check
      _
    $region27: #{llr_estimator_channel.1} parent=1 // pred_check_branch
      %39 = sbr.rel (0) target = $region29
    $region28: #{llr_estimator_channel.1} parent=1 // pred_region
      _
    $region29: #{llr_estimator_channel.1} parent=1 // pred_fallthru
      _
    // Predicated region
    $region30: #{llr_estimator_channel.1} parent=1 // pred_check
      _
    $region31: #{llr_estimator_channel.1} parent=1 // pred_check_branch
      %41 = sbr.rel (0) target = $region33
    $region32: #{llr_estimator_channel.1} parent=1 // pred_region
      _
    $region33: #{llr_estimator_channel.1} parent=1 // pred_fallthru
      _
    // Predicated region
    $region34: #{llr_estimator_channel.1} parent=1 // pred_check
      _
    $region35: #{llr_estimator_channel.1} parent=1 // pred_check_branch
      %43 = sbr.rel (0) target = $region37
    $region36: #{llr_estimator_channel.1} parent=1 // pred_region
      _
    $region37: #{llr_estimator_channel.1} parent=1 // pred_fallthru
      _
    // Predicated region
    $region38: #{llr_estimator_channel.1} parent=1 // pred_check
      _
    $region39: #{llr_estimator_channel.1} parent=1 // pred_check_branch
      %45 = sbr.rel (0) target = $region41
    $region40: #{llr_estimator_channel.1} parent=1 // pred_region
      %46 = dma.done [#allocation3], 1024
    $region41: #{llr_estimator_channel.1} parent=1 // pred_fallthru
      _
    %v48 = vld [vmem:[%s0] sm:$0xff]
    %v49 = vpack.c.bf16 %v48, %v48
    %v50 = vld [vmem:[%s1] sm:$0xf]
    %v51 = vld [vmem:[%s1 + $0x4] sm:$0xf]
    %v52 = vld [vmem:[%s1 + $0x8] sm:$0xf]
    %v53 = vld [vmem:[%s1 + $0xc] sm:$0xf]
    %v54 = vld [vmem:[%s1 + $0x10] sm:$0xf]
    %v55 = vld [vmem:[%s1 + $0x14] sm:$0xf]
    %v56 = vld [vmem:[%s1 + $0x18] sm:$0xf]
    %v57 = vld [vmem:[%s1 + $0x1c] sm:$0xf]
    %v58 = vld [vmem:[%s1 + $0x20] sm:$0x1]
    %v59 = vld [vmem:[%s2] sm:$0x1]
    %v61 = vlaneseq
    %v62 = vshrl.u32 %v61, 7
    %v63 = vsub.s32 0, %v62
    %v64 = vrot.slane %v59, %v63
    %v75 = vunpack.c.l.b16 %v50
    %v76 = vunpack.c.l.b16 %v51
    %v77 = vunpack.c.l.b16 %v52
    %v78 = vunpack.c.l.b16 %v53
    %v79 = vunpack.c.l.b16 %v54
    %v80 = vunpack.c.l.b16 %v55
    %v81 = vunpack.c.l.b16 %v56
    %v82 = vunpack.c.l.b16 %v57
    %v83 = vunpack.c.l.b16 %v58
    %v84 = vpack.c.b16 %v76, %v75
    %v85 = vpack.c.b16 %v78, %v77
    %v86 = vpack.c.b16 %v80, %v79
    %v87 = vpack.c.b16 %v82, %v81
    %v88 = vpack.c.b16 %v83, %v83
    %vm93 = vcmask 531456
    %v95 = vsel %vm93, %v49, 0
    %vm97 = vcmask 1040384
    %v98 = vsel 0, 4294967295, 65535
    %v99 = vsel %vm97, %v98, 0
    %v101 = vand.u32 %v88, %v99
    %103 = vmatprep.subr.bf16.mxu0 0
    %104 = vmatpush1.bf16.msra.mxu0 %v84
    %105 = vmatprep.subr.bf16.mxu0 0
    %106 = vmatpush1.bf16.msra.mxu0 %v85
    %107 = vmatprep.subr.bf16.mxu0 0
    %108 = vmatpush1.bf16.msra.mxu0 %v86
    %109 = vmatprep.subr.bf16.mxu0 0
    %110 = vmatpush1.bf16.msra.mxu0 %v87
    %111 = vmatprep.subr.bf16.mxu0 0
    %112 = vmatpush1.bf16.msra.mxu0 %v101
    %113 = vmatprep.subr.bf16.mxu0 0
    %114 = vmatpush1.bf16.msra.mxu0 0
    %115 = vmatprep.subr.bf16.mxu0 0
    %116 = vmatpush1.bf16.msra.mxu0 0
    %117 = vmatprep.subr.bf16.mxu0 0
    %118 = vmatpush1.bf16.msra.mxu0 0
    %119 = vmatprep.subr.bf16.mxu0 0
    %120 = vmatpush1.bf16.msra.mxu0 0
    %121 = vmatprep.subr.bf16.mxu0 0
    %122 = vmatpush1.bf16.msra.mxu0 0
    %123 = vmatprep.subr.bf16.mxu0 0
    %124 = vmatpush1.bf16.msra.mxu0 0
    %125 = vmatprep.subr.bf16.mxu0 0
    %126 = vmatpush1.bf16.msra.mxu0 0
    %127 = vmatprep.subr.bf16.mxu0 0
    %128 = vmatpush1.bf16.msra.mxu0 0
    %129 = vmatprep.subr.bf16.mxu0 0
    %130 = vmatpush1.bf16.msra.mxu0 0
    %131 = vmatprep.subr.bf16.mxu0 0
    %132 = vmatpush1.bf16.msra.mxu0 0
    %133 = vmatprep.subr.bf16.mxu0 0
    %134 = vmatpush1.bf16.msra.mxu0 0
    %135 = vmatprep.mubr.bf16.mxu0 0
    %136 = vmatmul.mubr.bf16.gmra.mrb[0].mxu0 %v95
    %v137 = vpop.f32.mrb[0].mxu0
    %v138 = vadd.f32 %v64, %v137
    %v139 = vpop.f32.mrb[0].mxu0
    %v140 = vpop.f32.mrb[0].mxu0
    %v141 = vpop.f32.mrb[0].mxu0
    %142 = vdwg.mxu0
    %v143 = vtanh.pop %v138
    %v144 = vpack.c.bf16 %v143, %v143
    %v145 = vld [vmem:[%s3] sm:$0xf]
    %v146 = vld [vmem:[%s3 + $0x4] sm:$0xf]
    %v147 = vld [vmem:[%s3 + $0x8] sm:$0xf]
    %v148 = vld [vmem:[%s3 + $0xc] sm:$0xf]
    %v149 = vld [vmem:[%s3 + $0x10] sm:$0xf]
    %v150 = vld [vmem:[%s3 + $0x14] sm:$0xf]
    %v151 = vld [vmem:[%s3 + $0x18] sm:$0xf]
    %v152 = vld [vmem:[%s3 + $0x1c] sm:$0xf]
    %v153 = vld [vmem:[%s3 + $0x20] sm:$0xf]
    %v154 = vld [vmem:[%s3 + $0x24] sm:$0xf]
    %v155 = vld [vmem:[%s3 + $0x28] sm:$0xf]
    %v156 = vld [vmem:[%s3 + $0x2c] sm:$0xf]
    %v157 = vld [vmem:[%s3 + $0x30] sm:$0xf]
    %v158 = vld [vmem:[%s3 + $0x34] sm:$0xf]
    %v159 = vld [vmem:[%s3 + $0x38] sm:$0xf]
    %v160 = vld [vmem:[%s3 + $0x3c] sm:$0xf]
    %v161 = vld [vmem:[%s4] sm:$0x1]
    %v163 = vlaneseq
    %v164 = vshrl.u32 %v163, 7
    %v165 = vsub.s32 0, %v164
    %v166 = vrot.slane %v161, %v165
    %v184 = vunpack.c.l.b16 %v145
    %v185 = vunpack.c.l.b16 %v146
    %v186 = vunpack.c.l.b16 %v147
    %v187 = vunpack.c.l.b16 %v148
    %v188 = vunpack.c.l.b16 %v149
    %v189 = vunpack.c.l.b16 %v150
    %v190 = vunpack.c.l.b16 %v151
    %v191 = vunpack.c.l.b16 %v152
    %v192 = vunpack.c.l.b16 %v153
    %v193 = vunpack.c.l.b16 %v154
    %v194 = vunpack.c.l.b16 %v155
    %v195 = vunpack.c.l.b16 %v156
    %v196 = vunpack.c.l.b16 %v157
    %v197 = vunpack.c.l.b16 %v158
    %v198 = vunpack.c.l.b16 %v159
    %v199 = vunpack.c.l.b16 %v160
    %v200 = vpack.c.b16 %v185, %v184
    %v201 = vpack.c.b16 %v187, %v186
    %v202 = vpack.c.b16 %v189, %v188
    %v203 = vpack.c.b16 %v191, %v190
    %v204 = vpack.c.b16 %v193, %v192
    %v205 = vpack.c.b16 %v195, %v194
    %v206 = vpack.c.b16 %v197, %v196
    %v207 = vpack.c.b16 %v199, %v198
    %216 = vmatprep.subr.bf16.mxu0 0
    %217 = vmatpush1.bf16.msra.mxu0 %v200
    %218 = vmatprep.subr.bf16.mxu0 0
    %219 = vmatpush1.bf16.msra.mxu0 %v201
    %220 = vmatprep.subr.bf16.mxu0 0
    %221 = vmatpush1.bf16.msra.mxu0 %v202
    %222 = vmatprep.subr.bf16.mxu0 0
    %223 = vmatpush1.bf16.msra.mxu0 %v203
    %224 = vmatprep.subr.bf16.mxu0 0
    %225 = vmatpush1.bf16.msra.mxu0 %v204
    %226 = vmatprep.subr.bf16.mxu0 0
    %227 = vmatpush1.bf16.msra.mxu0 %v205
    %228 = vmatprep.subr.bf16.mxu0 0
    %229 = vmatpush1.bf16.msra.mxu0 %v206
    %230 = vmatprep.subr.bf16.mxu0 0
    %231 = vmatpush1.bf16.msra.mxu0 %v207
    %232 = vmatprep.subr.bf16.mxu0 0
    %233 = vmatpush1.bf16.msra.mxu0 0
    %234 = vmatprep.subr.bf16.mxu0 0
    %235 = vmatpush1.bf16.msra.mxu0 0
    %236 = vmatprep.subr.bf16.mxu0 0
    %237 = vmatpush1.bf16.msra.mxu0 0
    %238 = vmatprep.subr.bf16.mxu0 0
    %239 = vmatpush1.bf16.msra.mxu0 0
    %240 = vmatprep.subr.bf16.mxu0 0
    %241 = vmatpush1.bf16.msra.mxu0 0
    %242 = vmatprep.subr.bf16.mxu0 0
    %243 = vmatpush1.bf16.msra.mxu0 0
    %244 = vmatprep.subr.bf16.mxu0 0
    %245 = vmatpush1.bf16.msra.mxu0 0
    %246 = vmatprep.subr.bf16.mxu0 0
    %247 = vmatpush1.bf16.msra.mxu0 0
    %248 = vmatprep.mubr.bf16.mxu0 0
    %249 = vmatmul.mubr.bf16.gmra.mrb[0].mxu0 %v144
    %v250 = vpop.f32.mrb[0].mxu0
    %v251 = vadd.f32 %v166, %v250
    %v252 = vpop.f32.mrb[0].mxu0
    %v253 = vpop.f32.mrb[0].mxu0
    %v254 = vpop.f32.mrb[0].mxu0
    %255 = vdwg.mxu0
    %v256 = vtanh.pop %v251
    %v257 = vpack.c.bf16 %v256, %v256
    %v258 = vld [vmem:[#allocation2] sm:$0xf]
    %v259 = vld [vmem:[#allocation2 + $0x4] sm:$0xf]
    %v260 = vld [vmem:[#allocation2 + $0x8] sm:$0xf]
    %v261 = vld [vmem:[#allocation2 + $0xc] sm:$0xf]
    %v262 = vld [vmem:[#allocation2 + $0x10] sm:$0xf]
    %v263 = vld [vmem:[#allocation2 + $0x14] sm:$0xf]
    %v264 = vld [vmem:[#allocation2 + $0x18] sm:$0xf]
    %v265 = vld [vmem:[#allocation2 + $0x1c] sm:$0xf]
    %v266 = vld [vmem:[#allocation2 + $0x20] sm:$0xf]
    %v267 = vld [vmem:[#allocation2 + $0x24] sm:$0xf]
    %v268 = vld [vmem:[#allocation2 + $0x28] sm:$0xf]
    %v269 = vld [vmem:[#allocation2 + $0x2c] sm:$0xf]
    %v270 = vld [vmem:[#allocation2 + $0x30] sm:$0xf]
    %v271 = vld [vmem:[#allocation2 + $0x34] sm:$0xf]
    %v272 = vld [vmem:[#allocation2 + $0x38] sm:$0xf]
    %v273 = vld [vmem:[#allocation2 + $0x3c] sm:$0xf]
    %v274 = vld [vmem:[%s6] sm:$0x1]
    %v276 = vlaneseq
    %v277 = vshrl.u32 %v276, 7
    %v278 = vsub.s32 0, %v277
    %v279 = vrot.slane %v274, %v278
    %v297 = vunpack.c.l.b16 %v258
    %v298 = vunpack.c.l.b16 %v259
    %v299 = vunpack.c.l.b16 %v260
    %v300 = vunpack.c.l.b16 %v261
    %v301 = vunpack.c.l.b16 %v262
    %v302 = vunpack.c.l.b16 %v263
    %v303 = vunpack.c.l.b16 %v264
    %v304 = vunpack.c.l.b16 %v265
    %v305 = vunpack.c.l.b16 %v266
    %v306 = vunpack.c.l.b16 %v267
    %v307 = vunpack.c.l.b16 %v268
    %v308 = vunpack.c.l.b16 %v269
    %v309 = vunpack.c.l.b16 %v270
    %v310 = vunpack.c.l.b16 %v271
    %v311 = vunpack.c.l.b16 %v272
    %v312 = vunpack.c.l.b16 %v273
    %v313 = vpack.c.b16 %v298, %v297
    %v314 = vpack.c.b16 %v300, %v299
    %v315 = vpack.c.b16 %v302, %v301
    %v316 = vpack.c.b16 %v304, %v303
    %v317 = vpack.c.b16 %v306, %v305
    %v318 = vpack.c.b16 %v308, %v307
    %v319 = vpack.c.b16 %v310, %v309
    %v320 = vpack.c.b16 %v312, %v311
    %329 = vmatprep.subr.bf16.mxu0 0
    %330 = vmatpush1.bf16.msra.mxu0 %v313
    %331 = vmatprep.subr.bf16.mxu0 0
    %332 = vmatpush1.bf16.msra.mxu0 %v314
    %333 = vmatprep.subr.bf16.mxu0 0
    %334 = vmatpush1.bf16.msra.mxu0 %v315
    %335 = vmatprep.subr.bf16.mxu0 0
    %336 = vmatpush1.bf16.msra.mxu0 %v316
    %337 = vmatprep.subr.bf16.mxu0 0
    %338 = vmatpush1.bf16.msra.mxu0 %v317
    %339 = vmatprep.subr.bf16.mxu0 0
    %340 = vmatpush1.bf16.msra.mxu0 %v318
    %341 = vmatprep.subr.bf16.mxu0 0
    %342 = vmatpush1.bf16.msra.mxu0 %v319
    %343 = vmatprep.subr.bf16.mxu0 0
    %344 = vmatpush1.bf16.msra.mxu0 %v320
    %345 = vmatprep.subr.bf16.mxu0 0
    %346 = vmatpush1.bf16.msra.mxu0 0
    %347 = vmatprep.subr.bf16.mxu0 0
    %348 = vmatpush1.bf16.msra.mxu0 0
    %349 = vmatprep.subr.bf16.mxu0 0
    %350 = vmatpush1.bf16.msra.mxu0 0
    %351 = vmatprep.subr.bf16.mxu0 0
    %352 = vmatpush1.bf16.msra.mxu0 0
    %353 = vmatprep.subr.bf16.mxu0 0
    %354 = vmatpush1.bf16.msra.mxu0 0
    %355 = vmatprep.subr.bf16.mxu0 0
    %356 = vmatpush1.bf16.msra.mxu0 0
    %357 = vmatprep.subr.bf16.mxu0 0
    %358 = vmatpush1.bf16.msra.mxu0 0
    %359 = vmatprep.subr.bf16.mxu0 0
    %360 = vmatpush1.bf16.msra.mxu0 0
    %361 = vmatprep.mubr.bf16.mxu0 0
    %362 = vmatmul.mubr.bf16.gmra.mrb[0].mxu0 %v257
    %v363 = vpop.f32.mrb[0].mxu0
    %v364 = vadd.f32 %v279, %v363
    %v365 = vpop.f32.mrb[0].mxu0
    %v366 = vpop.f32.mrb[0].mxu0
    %v367 = vpop.f32.mrb[0].mxu0
    %368 = vdwg.mxu0
    %v369 = vtanh.pop %v364
    %v370 = vpack.c.bf16 %v369, %v369
    %v371 = vld [vmem:[%s7] sm:$0xf]
    %v372 = vld [vmem:[%s7 + $0x4] sm:$0xf]
    %v373 = vld [vmem:[%s7 + $0x8] sm:$0xf]
    %v374 = vld [vmem:[%s7 + $0xc] sm:$0xf]
    %v375 = vld [vmem:[%s7 + $0x10] sm:$0xf]
    %v376 = vld [vmem:[%s7 + $0x14] sm:$0xf]
    %v377 = vld [vmem:[%s7 + $0x18] sm:$0xf]
    %v378 = vld [vmem:[%s7 + $0x1c] sm:$0xf]
    %v379 = vld [vmem:[%s7 + $0x20] sm:$0xf]
    %v380 = vld [vmem:[%s7 + $0x24] sm:$0xf]
    %v381 = vld [vmem:[%s7 + $0x28] sm:$0xf]
    %v382 = vld [vmem:[%s7 + $0x2c] sm:$0xf]
    %v383 = vld [vmem:[%s7 + $0x30] sm:$0xf]
    %v384 = vld [vmem:[%s7 + $0x34] sm:$0xf]
    %v385 = vld [vmem:[%s7 + $0x38] sm:$0xf]
    %v386 = vld [vmem:[%s7 + $0x3c] sm:$0xf]
    %v387 = vld [vmem:[%s8] sm:$0x1]
    %v389 = vlaneseq
    %v390 = vshrl.u32 %v389, 7
    %v391 = vsub.s32 0, %v390
    %v392 = vrot.slane %v387, %v391
    %v410 = vunpack.c.l.b16 %v371
    %v411 = vunpack.c.l.b16 %v372
    %v412 = vunpack.c.l.b16 %v373
    %v413 = vunpack.c.l.b16 %v374
    %v414 = vunpack.c.l.b16 %v375
    %v415 = vunpack.c.l.b16 %v376
    %v416 = vunpack.c.l.b16 %v377
    %v417 = vunpack.c.l.b16 %v378
    %v418 = vunpack.c.l.b16 %v379
    %v419 = vunpack.c.l.b16 %v380
    %v420 = vunpack.c.l.b16 %v381
    %v421 = vunpack.c.l.b16 %v382
    %v422 = vunpack.c.l.b16 %v383
    %v423 = vunpack.c.l.b16 %v384
    %v424 = vunpack.c.l.b16 %v385
    %v425 = vunpack.c.l.b16 %v386
    %v426 = vpack.c.b16 %v411, %v410
    %v427 = vpack.c.b16 %v413, %v412
    %v428 = vpack.c.b16 %v415, %v414
    %v429 = vpack.c.b16 %v417, %v416
    %v430 = vpack.c.b16 %v419, %v418
    %v431 = vpack.c.b16 %v421, %v420
    %v432 = vpack.c.b16 %v423, %v422
    %v433 = vpack.c.b16 %v425, %v424
    %442 = vmatprep.subr.bf16.mxu0 0
    %443 = vmatpush1.bf16.msra.mxu0 %v426
    %444 = vmatprep.subr.bf16.mxu0 0
    %445 = vmatpush1.bf16.msra.mxu0 %v427
    %446 = vmatprep.subr.bf16.mxu0 0
    %447 = vmatpush1.bf16.msra.mxu0 %v428
    %448 = vmatprep.subr.bf16.mxu0 0
    %449 = vmatpush1.bf16.msra.mxu0 %v429
    %450 = vmatprep.subr.bf16.mxu0 0
    %451 = vmatpush1.bf16.msra.mxu0 %v430
    %452 = vmatprep.subr.bf16.mxu0 0
    %453 = vmatpush1.bf16.msra.mxu0 %v431
    %454 = vmatprep.subr.bf16.mxu0 0
    %455 = vmatpush1.bf16.msra.mxu0 %v432
    %456 = vmatprep.subr.bf16.mxu0 0
    %457 = vmatpush1.bf16.msra.mxu0 %v433
    %458 = vmatprep.subr.bf16.mxu0 0
    %459 = vmatpush1.bf16.msra.mxu0 0
    %460 = vmatprep.subr.bf16.mxu0 0
    %461 = vmatpush1.bf16.msra.mxu0 0
    %462 = vmatprep.subr.bf16.mxu0 0
    %463 = vmatpush1.bf16.msra.mxu0 0
    %464 = vmatprep.subr.bf16.mxu0 0
    %465 = vmatpush1.bf16.msra.mxu0 0
    %466 = vmatprep.subr.bf16.mxu0 0
    %467 = vmatpush1.bf16.msra.mxu0 0
    %468 = vmatprep.subr.bf16.mxu0 0
    %469 = vmatpush1.bf16.msra.mxu0 0
    %470 = vmatprep.subr.bf16.mxu0 0
    %471 = vmatpush1.bf16.msra.mxu0 0
    %472 = vmatprep.subr.bf16.mxu0 0
    %473 = vmatpush1.bf16.msra.mxu0 0
    %474 = vmatprep.mubr.bf16.mxu0 0
    %475 = vmatmul.mubr.bf16.gmra.mrb[0].mxu0 %v370
    %v476 = vpop.f32.mrb[0].mxu0
    %v477 = vadd.f32 %v392, %v476
    %v478 = vpop.f32.mrb[0].mxu0
    %v479 = vpop.f32.mrb[0].mxu0
    %v480 = vpop.f32.mrb[0].mxu0
    %481 = vdwg.mxu0
    %v482 = vtanh.pop %v477
    %v483 = vpack.c.bf16 %v482, %v482
    %vm484 = vcmask 519168
    %485 = vst.msk [vmem:[#allocation5] sm:$0xf] %vm484, %v483
    // Predicated region
    $region42: #{llr_estimator_channel.1} parent=1 // pred_check
      _
    $region43: #{llr_estimator_channel.1} parent=1 // pred_check_branch
      %487 = sbr.rel (0) target = $region45
    $region44: #{llr_estimator_channel.1} parent=1 // pred_region
      %s489 = ssub.s32 64, 64
      %490 = vsyncadd [#allocation4], %s489
      %s492 = sshll.u32 [#allocation5], 4
      %s493 = int_to_ptr.vmem [resolvable:$true] %s492
      %495 = dma.vmem_to_hbm [thread:$0]  %s493, 64, %s9, [#allocation4]
    $region45: #{llr_estimator_channel.1} parent=1 // pred_fallthru
      _
    // Predicated region
    $region46: #{llr_estimator_channel.1} parent=1 // pred_check
      _
    $region47: #{llr_estimator_channel.1} parent=1 // pred_check_branch
      %497 = sbr.rel (0) target = $region49
    $region48: #{llr_estimator_channel.1} parent=1 // pred_region
      %498 = dma.done [#allocation4], 64
    $region49: #{llr_estimator_channel.1} parent=1 // pred_fallthru
      _
    %499 = vsyncpa [#allocation3], 1
    %500 = vsyncpa [#allocation4], 1

</llo_original>
